<compile_context>
chip_gen: v6e
topology: v6e:2x2x1
jax: 0.10.0
libtpu: 0.0.40
codegen_flags: <defaults>
</compile_context>

<pallas_src>
import jax
import jax.numpy as jnp
from jax.experimental import pallas as pl
from jax.experimental.pallas import tpu as pltpu


def linearmap_kernel(x_ref, w_ref, p_ref, o_ref):
    # x_ref: (B, K)   full batch, full input dim
    # w_ref: (K, TN)  feature tile of the weight
    # p_ref: (2, TN)  rows: [gamma, beta]
    # o_ref: (B, TN)
    x = x_ref[...]
    w = w_ref[...]
    B = x.shape[0]
    inv_b = jnp.float32(1.0 / B)

    # Linear, bias omitted: a per-feature constant is cancelled exactly by the
    # training-mode BatchNorm mean subtraction below.
    y = jnp.dot(x, w, preferred_element_type=jnp.float32)  # (B, TN), f32 accumulate on MXU

    # Batch mean via the MXU: sum_b(x @ W) == (sum_b x) @ W  -- replaces a (B, TN)
    # cross-sublane reduce with a (B, K) reduce + a tiny (1,K)x(K,TN) matmul.
    xs = jnp.sum(x, axis=0, keepdims=True)  # (1, K)
    mean = jnp.dot(xs, w, preferred_element_type=jnp.float32) * inv_b  # (1, TN)

    # Centered variance (two-pass style): robust against cancellation when |mean| >> std.
    d = y - mean
    var = jnp.sum(d * d, axis=0, keepdims=True) * inv_b

    # gamma / sqrt(var + eps): rsqrt goes to the EUP slot. Since d is already centered,
    # the affine shift is simply beta.
    eps = jnp.float32(1e-5)
    scale = p_ref[0:1, :] * jax.lax.rsqrt(var + eps)

    # Normalize + affine + ReLU in one fused full-size VPU pass.
    o_ref[...] = jnp.maximum(d * scale + p_ref[1:2, :], 0.0).astype(o_ref.dtype)


def _pick_tile_n(N):
    """v7x has two TensorCores -> split N so each TC gets a lane-dense tile.
    v5e/v6e are single-TC -> keep one tile (no per-step overhead)."""
    try:
        kind = jax.devices()[0].device_kind.lower()
    except Exception:  # pragma: no cover - defensive, never expected on TPU
        kind = ""
    is_v7 = ("v7" in kind) or ("tpu7" in kind)
    if is_v7 and N % 128 == 0 and N // 128 >= 2:
        return 128
    if N % 256 == 0:
        return 256
    return N  # fall back to a single full-width tile


def linear_map(x, w, b, gamma, beta, *, tn=None, compute_dtype=None):
    """Fused Linear -> BatchNorm1d(train) -> ReLU.

    `b` is accepted for API compatibility with nn.Linear but is NOT used: adding a
    per-feature constant before training-mode BatchNorm is a mathematical no-op.
    `compute_dtype=jnp.bfloat16` halves x/W HBM traffic (recommended on v5e); the
    matmul still accumulates in f32 and the output stays f32.
    """
    del b  # algebraically dead under training-mode BatchNorm
    B, K = x.shape
    K2, N = w.shape
    assert K == K2

    if compute_dtype is not None:
        x = x.astype(compute_dtype)
        w = w.astype(compute_dtype)

    if tn is None:
        tn = _pick_tile_n(N)
    tn = min(tn, N)
    assert N % tn == 0
    assert tn == N or tn % 128 == 0, "feature tile must be lane-dense"

    # Pack gamma / beta into one (2, N) parameter slab (single DMA per tile).
    params = jnp.stack([gamma.astype(jnp.float32), beta.astype(jnp.float32)], axis=0)

    grid = (N // tn,)
    x_item = jnp.dtype(x.dtype).itemsize
    w_item = jnp.dtype(w.dtype).itemsize
    cost = pl.CostEstimate(
        flops=2 * B * K * N + 2 * K * N + 8 * B * N,
        transcendentals=N,  # one rsqrt per feature
        bytes_accessed=x_item * B * K + w_item * K * N + 4 * (2 * N + B * N),
    )

    return pl.pallas_call(
        linearmap_kernel,
        out_shape=jax.ShapeDtypeStruct((B, N), jnp.float32),
        grid_spec=pltpu.PrefetchScalarGridSpec(
            num_scalar_prefetch=0,
            grid=grid,
            in_specs=[
                pl.BlockSpec((B, K), lambda j: (0, 0)),   # x: full batch (never tile B)
                pl.BlockSpec((K, tn), lambda j: (0, j)),  # W feature tile
                pl.BlockSpec((2, tn), lambda j: (0, j)),  # packed [gamma; beta] tile
            ],
            out_specs=pl.BlockSpec((B, tn), lambda j: (0, j)),
        ),
        compiler_params=pltpu.CompilerParams(
            dimension_semantics=("parallel",),
            # Explicit scoped-VMEM budget: generous for the tiny live set here and safe on
            # every generation (<= v7x's 64 MiB physical). For very large B, shrink tn.
            vmem_limit_bytes=32 * 1024 * 1024,
        ),
        cost_estimate=cost,
    )(x, w, params)


def reference(x, w, b, gamma, beta):
    # Faithful to the PyTorch module (keeps the bias even though it cancels under BN).
    y = x.astype(jnp.float32) @ w.astype(jnp.float32) + b
    mean = jnp.mean(y, axis=0, keepdims=True)
    var = jnp.mean((y - mean) ** 2, axis=0, keepdims=True)
    y_hat = (y - mean) / jnp.sqrt(var + 1e-5)
    return jnp.maximum(gamma.reshape(1, -1) * y_hat + beta.reshape(1, -1), 0.0)


if __name__ == "__main__":
    # Small shapes consistent with the module: LinearMap(INPUT_DIM=128) -> HL1=256
    B = 8            # batch (>1 required for BatchNorm1d training-mode stats)
    INPUT_DIM = 128
    HL1 = 256

    key = jax.random.PRNGKey(0)
    kx, kw, kb, kg, kbe = jax.random.split(key, 5)

    x = jax.random.normal(kx, (B, INPUT_DIM), dtype=jnp.float32)
    # Deterministic parameter init (synthetic; matches PyTorch shapes, not a checkpoint)
    w = jax.random.normal(kw, (INPUT_DIM, HL1), dtype=jnp.float32) * (1.0 / jnp.sqrt(INPUT_DIM))
    b = jax.random.normal(kb, (HL1,), dtype=jnp.float32) * 0.01
    gamma = 1.0 + 0.1 * jax.random.normal(kg, (HL1,), dtype=jnp.float32)
    beta = 0.1 * jax.random.normal(kbe, (HL1,), dtype=jnp.float32)

    ref = reference(x, w, b, gamma, beta)

    # f32 path (strict check)
    out = linear_map(x, w, b, gamma, beta)
    out = jax.block_until_ready(out)
    assert out.shape == (B, HL1)
    assert jnp.allclose(out, ref, atol=1e-4, rtol=1e-4), "f32 kernel mismatch vs reference"

    # bf16 compute path (halves weight/activation DMA; biggest relative win on v5e).
    # Looser tolerance: bf16 inputs drift slightly vs the f32 reference.
    out_bf16 = linear_map(x, w, b, gamma, beta, compute_dtype=jnp.bfloat16)
    out_bf16 = jax.block_until_ready(out_bf16)
    assert jnp.allclose(out_bf16, ref, atol=5e-2, rtol=5e-2), "bf16 kernel drift too large"

    # TODO(synk): BatchNorm1d running_mean/running_var buffer updates (training-side state,
    # not part of the forward output) are not materialized here.
    print("KERNEL_OK")
</pallas_src>

<mosaic_0001>
module attributes {stable_mosaic.version = 11 : i64} {
  func.func @linearmap_kernel(%arg0: i32, %arg1: memref<8x128xf32, #tpu.memory_space<vmem>>, %arg2: memref<128x256xf32, #tpu.memory_space<vmem>>, %arg3: memref<2x256xf32, #tpu.memory_space<vmem>>, %arg4: memref<8x256xf32, #tpu.memory_space<vmem>>) attributes {dimension_semantics = [#tpu.dimension_semantics<parallel>], iteration_bounds = array<i64: 1>, scalar_prefetch = 0 : i64, scratch_operands = 0 : i64, tpu.core_type = #tpu.core_type<tc>, window_params = [{pipeline_mode = #tpu.pipeline_mode<synchronous>, transform_indices = @transform_0, window_bounds = array<i64: 8, 128>}, {transform_indices = @transform_1, window_bounds = array<i64: 128, 256>}, {transform_indices = @transform_2, window_bounds = array<i64: 2, 256>}, {transform_indices = @transform_3, window_bounds = array<i64: 8, 256>}]} {
    %c0 = arith.constant 0 : index
    %c0_0 = arith.constant 0 : index
    %0 = vector.load %arg1[%c0, %c0_0] : memref<8x128xf32, #tpu.memory_space<vmem>>, vector<8x128xf32>
    %c0_1 = arith.constant 0 : index
    %c0_2 = arith.constant 0 : index
    %1 = vector.load %arg2[%c0_1, %c0_2] : memref<128x256xf32, #tpu.memory_space<vmem>>, vector<128x256xf32>
    %cst = arith.constant dense<0.000000e+00> : vector<8x256xf32>
    %2 = tpu.matmul %0, %1, %cst {dimension_numbers = #tpu.dot_dimension_numbers<[1], [0], [0], [1], [0, 0, 1, 1], [], []>} : vector<8x128xf32>, vector<128x256xf32>, vector<8x256xf32> -> vector<8x256xf32>
    %cst_3 = arith.constant dense<0.000000e+00> : vector<128xf32>
    %3 = vector.multi_reduction <add>, %0, %cst_3 [0] : vector<8x128xf32> to vector<128xf32>
    %4 = vector.shape_cast %3 : vector<128xf32> to vector<1x128xf32>
    %cst_4 = arith.constant dense<0.000000e+00> : vector<1x256xf32>
    %5 = tpu.matmul %4, %1, %cst_4 {dimension_numbers = #tpu.dot_dimension_numbers<[1], [0], [0], [1], [0, 0, 1, 1], [], []>} : vector<1x128xf32>, vector<128x256xf32>, vector<1x256xf32> -> vector<1x256xf32>
    %cst_5 = arith.constant 1.250000e-01 : f32
    %6 = vector.broadcast %cst_5 : f32 to vector<1x256xf32>
    %7 = arith.mulf %5, %6 : vector<1x256xf32>
    %8 = vector.broadcast %7 : vector<1x256xf32> to vector<8x256xf32>
    %9 = arith.subf %2, %8 : vector<8x256xf32>
    %10 = arith.mulf %9, %9 : vector<8x256xf32>
    %cst_6 = arith.constant dense<0.000000e+00> : vector<256xf32>
    %11 = vector.multi_reduction <add>, %10, %cst_6 [0] : vector<8x256xf32> to vector<256xf32>
    %12 = vector.shape_cast %11 : vector<256xf32> to vector<1x256xf32>
    %cst_7 = arith.constant 1.250000e-01 : f32
    %13 = vector.broadcast %cst_7 : f32 to vector<1x256xf32>
    %14 = arith.mulf %12, %13 : vector<1x256xf32>
    %c0_8 = arith.constant 0 : index
    %c0_9 = arith.constant 0 : index
    %15 = vector.load %arg3[%c0_8, %c0_9] : memref<2x256xf32, #tpu.memory_space<vmem>>, vector<1x256xf32>
    %cst_10 = arith.constant 9.99999974E-6 : f32
    %16 = vector.broadcast %cst_10 : f32 to vector<1x256xf32>
    %17 = arith.addf %14, %16 : vector<1x256xf32>
    %18 = math.rsqrt %17 : vector<1x256xf32>
    %19 = arith.mulf %15, %18 : vector<1x256xf32>
    %20 = vector.broadcast %19 : vector<1x256xf32> to vector<8x256xf32>
    %21 = arith.mulf %9, %20 : vector<8x256xf32>
    %c1 = arith.constant 1 : index
    %c0_11 = arith.constant 0 : index
    %22 = vector.load %arg3[%c1, %c0_11] : memref<2x256xf32, #tpu.memory_space<vmem>>, vector<1x256xf32>
    %23 = vector.broadcast %22 : vector<1x256xf32> to vector<8x256xf32>
    %24 = arith.addf %21, %23 : vector<8x256xf32>
    %cst_12 = arith.constant 0.000000e+00 : f32
    %25 = vector.broadcast %cst_12 : f32 to vector<8x256xf32>
    %26 = arith.maximumf %24, %25 : vector<8x256xf32>
    %c0_13 = arith.constant 0 : index
    %c0_14 = arith.constant 0 : index
    %27 = vector.load %arg4[%c0_13, %c0_14] : memref<8x256xf32, #tpu.memory_space<vmem>>, vector<8x256xf32>
    tpu.vector_store %arg4[%c0_13, %c0_14], %26 {strides = array<i32>} : memref<8x256xf32, #tpu.memory_space<vmem>>, vector<8x256xf32>,
    return
  }
  func.func @transform_0(%arg0: i32) -> (i32, i32) {
    %c0_i32 = arith.constant 0 : i32
    %c0_i32_0 = arith.constant 0 : i32
    %c0_i32_1 = arith.constant 0 : i32
    return %c0_i32, %c0_i32_0 : i32, i32
  }
  func.func @transform_1(%arg0: i32) -> (i32, i32) {
    %c0_i32 = arith.constant 0 : i32
    %c0_i32_0 = arith.constant 0 : i32
    return %c0_i32, %arg0 : i32, i32
  }
  func.func @transform_2(%arg0: i32) -> (i32, i32) {
    %c0_i32 = arith.constant 0 : i32
    %c0_i32_0 = arith.constant 0 : i32
    return %c0_i32, %arg0 : i32, i32
  }
  func.func @transform_3(%arg0: i32) -> (i32, i32) {
    %c0_i32 = arith.constant 0 : i32
    %c0_i32_0 = arith.constant 0 : i32
    return %c0_i32, %arg0 : i32, i32
  }
}

</mosaic_0001>

<llo_original>
// kernel: tpu_custom_call.1
$region0: #{tpu_custom_call.1}
  #allocation0 [shape = 'u32[]', space=smem, size = 0x4, offset = 0x4, fixed_abs, tag = 'smem constant byte address 0x4 - core index']
  #allocation1 [shape = 'u32[144,128]{1,0:T(1,128)}', space=vmem, size = 0x12000, scoped, tag = 'internal scratch']
  %s0 = inlined_call_operand.hbm [shape: f32[8,128], index: 0, kind: input, shape index: {}]
  %s1 = inlined_call_operand.hbm [shape: f32[128,256], index: 1, kind: input, shape index: {}]
  %s2 = inlined_call_operand.hbm [shape: f32[2,256], index: 2, kind: input, shape index: {}]
  %s3 = inlined_call_operand.hbm [shape: f32[8,256], index: 3, kind: output, shape index: {}]
  %s4 = sld [smem:[#allocation0]]
  $region34: #{tpu_custom_call.1} parent=0
    _
  %s6 = ssub.s32 1, %s4
  %s7 = scalar_select 0, %s6, %s4
  $region1: #{tpu_custom_call.1} parent=0
    #allocation2 [shape = 'u8[4096]{0}', space=vmem, size = 0x1000, scoped, tag = 'input window, operand 0, single buffered']
    #allocation3 [shape = 's32[1]{0}', space=sflag, size = 0x4, scoped, tag = 'scoped memory for tpu_custom_call.1']
    #allocation4 [shape = 's32[1]{0}', space=sflag, size = 0x4, scoped, tag = 'scoped memory for tpu_custom_call.1']
    #allocation5 [shape = 'u8[131072]{0}', space=vmem, size = 0x20000, scoped, tag = 'input window, operand 1, single buffered']
    #allocation6 [shape = 's32[1]{0}', space=sflag, size = 0x4, scoped, tag = 'scoped memory for tpu_custom_call.1']
    #allocation7 [shape = 'u8[2048]{0}', space=vmem, size = 0x800, scoped, tag = 'input window, operand 2, single buffered']
    #allocation8 [shape = 'u8[8192]{0}', space=vmem, size = 0x2000, scoped, tag = 'output window, operand 0, single buffered']
    %8 = vsyncpa [#allocation3], 0
    %9 = vsyncpa [#allocation6], 0
    %10 = vsyncpa [#allocation4], 0
    // Predicated region
    $region2: #{tpu_custom_call.1} parent=1 // pred_check
      _
    $region3: #{tpu_custom_call.1} parent=1 // pred_check_branch
      %12 = sbr.rel (0) target = $region5
    $region4: #{tpu_custom_call.1} parent=1 // pred_region
      %s14 = ssub.s32 128, 128
      %15 = vsyncadd [#allocation3], %s14
      %s17 = sshll.u32 [#allocation2], 4
      %s18 = int_to_ptr.vmem [resolvable:$true] %s17
      %20 = dma.hbm_to_vmem [thread:$0]  %s0, 128, %s18, [#allocation3]
    $region5: #{tpu_custom_call.1} parent=1 // pred_fallthru
      _
    // Predicated region
    $region6: #{tpu_custom_call.1} parent=1 // pred_check
      _
    $region7: #{tpu_custom_call.1} parent=1 // pred_check_branch
      %22 = sbr.rel (0) target = $region9
    $region8: #{tpu_custom_call.1} parent=1 // pred_region
      %s24 = ssub.s32 4096, 4096
      %25 = vsyncadd [#allocation6], %s24
      %s26 = sshll.u32 [#allocation5], 4
      %s27 = int_to_ptr.vmem [resolvable:$true] %s26
      %32 = dma.hbm_to_vmem [thread:$0]  %s1, 4096, %s27, [#allocation6], 256, 256, 16
    $region9: #{tpu_custom_call.1} parent=1 // pred_fallthru
      _
    // Predicated region
    $region10: #{tpu_custom_call.1} parent=1 // pred_check
      _
    $region11: #{tpu_custom_call.1} parent=1 // pred_check_branch
      %34 = sbr.rel (0) target = $region13
    $region12: #{tpu_custom_call.1} parent=1 // pred_region
      %s36 = ssub.s32 64, 64
      %37 = vsyncadd [#allocation6], %s36
      %s39 = sshll.u32 [#allocation7], 4
      %s40 = int_to_ptr.vmem [resolvable:$true] %s39
      %42 = dma.hbm_to_vmem [thread:$0]  %s2, 64, %s40, [#allocation6]
    $region13: #{tpu_custom_call.1} parent=1 // pred_fallthru
      _
    // Predicated region
    $region14: #{tpu_custom_call.1} parent=1 // pred_check
      _
    $region15: #{tpu_custom_call.1} parent=1 // pred_check_branch
      %44 = sbr.rel (0) target = $region17
    $region16: #{tpu_custom_call.1} parent=1 // pred_region
      %45 = dma.done [#allocation3], 128
    $region17: #{tpu_custom_call.1} parent=1 // pred_fallthru
      _
    // Predicated region
    $region18: #{tpu_custom_call.1} parent=1 // pred_check
      _
    $region19: #{tpu_custom_call.1} parent=1 // pred_check_branch
      %47 = sbr.rel (0) target = $region21
    $region20: #{tpu_custom_call.1} parent=1 // pred_region
      %48 = dma.done [#allocation6], 4096
    $region21: #{tpu_custom_call.1} parent=1 // pred_fallthru
      _
    // Predicated region
    $region22: #{tpu_custom_call.1} parent=1 // pred_check
      _
    $region23: #{tpu_custom_call.1} parent=1 // pred_check_branch
      %50 = sbr.rel (0) target = $region25
    $region24: #{tpu_custom_call.1} parent=1 // pred_region
      %51 = dma.done [#allocation6], 64
    $region25: #{tpu_custom_call.1} parent=1 // pred_fallthru
      _
    %v52 = vld [vmem:[#allocation2] sm:$0xff]
    %v53 = vld [vmem:[#allocation5] sm:$0xff]
    %v54 = vld [vmem:[#allocation5 + $0x8] sm:$0xff]
    %v55 = vld [vmem:[#allocation5 + $0x10] sm:$0xff]
    %v56 = vld [vmem:[#allocation5 + $0x18] sm:$0xff]
    %v57 = vld [vmem:[#allocation5 + $0x20] sm:$0xff]
    %v58 = vld [vmem:[#allocation5 + $0x28] sm:$0xff]
    %v59 = vld [vmem:[#allocation5 + $0x30] sm:$0xff]
    %v60 = vld [vmem:[#allocation5 + $0x38] sm:$0xff]
    %v61 = vld [vmem:[#allocation5 + $0x40] sm:$0xff]
    %v62 = vld [vmem:[#allocation5 + $0x48] sm:$0xff]
    %v63 = vld [vmem:[#allocation5 + $0x50] sm:$0xff]
    %v64 = vld [vmem:[#allocation5 + $0x58] sm:$0xff]
    %v65 = vld [vmem:[#allocation5 + $0x60] sm:$0xff]
    %v66 = vld [vmem:[#allocation5 + $0x68] sm:$0xff]
    %v67 = vld [vmem:[#allocation5 + $0x70] sm:$0xff]
    %v68 = vld [vmem:[#allocation5 + $0x78] sm:$0xff]
    %v69 = vld [vmem:[#allocation5 + $0x80] sm:$0xff]
    %v70 = vld [vmem:[#allocation5 + $0x88] sm:$0xff]
    %v71 = vld [vmem:[#allocation5 + $0x90] sm:$0xff]
    %v72 = vld [vmem:[#allocation5 + $0x98] sm:$0xff]
    %v73 = vld [vmem:[#allocation5 + $0xa0] sm:$0xff]
    %v74 = vld [vmem:[#allocation5 + $0xa8] sm:$0xff]
    %v75 = vld [vmem:[#allocation5 + $0xb0] sm:$0xff]
    %v76 = vld [vmem:[#allocation5 + $0xb8] sm:$0xff]
    %v77 = vld [vmem:[#allocation5 + $0xc0] sm:$0xff]
    %v78 = vld [vmem:[#allocation5 + $0xc8] sm:$0xff]
    %v79 = vld [vmem:[#allocation5 + $0xd0] sm:$0xff]
    %v80 = vld [vmem:[#allocation5 + $0xd8] sm:$0xff]
    %v81 = vld [vmem:[#allocation5 + $0xe0] sm:$0xff]
    %v82 = vld [vmem:[#allocation5 + $0xe8] sm:$0xff]
    %v83 = vld [vmem:[#allocation5 + $0xf0] sm:$0xff]
    %v84 = vld [vmem:[#allocation5 + $0xf8] sm:$0xff]
    %85 = vmatprep.subr.mxu0 %v84
    %86 = vmatpush1.msra.mxu0 %v83
    %87 = vmatprep.subr.mxu0 %v82
    %88 = vmatpush1.msra.mxu0 %v81
    %89 = vmatprep.subr.mxu0 %v80
    %90 = vmatpush1.msra.mxu0 %v79
    %91 = vmatprep.subr.mxu0 %v78
    %92 = vmatpush1.msra.mxu0 %v77
    %93 = vmatprep.subr.mxu0 %v76
    %94 = vmatpush1.msra.mxu0 %v75
    %95 = vmatprep.subr.mxu0 %v74
    %96 = vmatpush1.msra.mxu0 %v73
    %97 = vmatprep.subr.mxu0 %v72
    %98 = vmatpush1.msra.mxu0 %v71
    %99 = vmatprep.subr.mxu0 %v70
    %100 = vmatpush1.msra.mxu0 %v69
    %101 = vmatprep.subr.mxu0 %v68
    %102 = vmatpush1.msra.mxu0 %v67
    %103 = vmatprep.subr.mxu0 %v66
    %104 = vmatpush1.msra.mxu0 %v65
    %105 = vmatprep.subr.mxu0 %v64
    %106 = vmatpush1.msra.mxu0 %v63
    %107 = vmatprep.subr.mxu0 %v62
    %108 = vmatpush1.msra.mxu0 %v61
    %109 = vmatprep.subr.mxu0 %v60
    %110 = vmatpush1.msra.mxu0 %v59
    %111 = vmatprep.subr.mxu0 %v58
    %112 = vmatpush1.msra.mxu0 %v57
    %113 = vmatprep.subr.mxu0 %v56
    %114 = vmatpush1.msra.mxu0 %v55
    %115 = vmatprep.subr.mxu0 %v54
    %116 = vmatpush1.msra.mxu0 %v53
    %117 = vmatprep.subr.mxu0 0.0
    %118 = vmatpush2.msra.mxu0 0.0
    %119 = vmatprep.subr.mxu0 0.0
    %120 = vmatpush2.msra.mxu0 0.0
    %121 = vmatprep.subr.mxu0 0.0
    %122 = vmatpush2.msra.mxu0 0.0
    %123 = vmatprep.subr.mxu0 0.0
    %124 = vmatpush2.msra.mxu0 0.0
    %125 = vmatprep.subr.mxu0 0.0
    %126 = vmatpush2.msra.mxu0 0.0
    %127 = vmatprep.subr.mxu0 0.0
    %128 = vmatpush2.msra.mxu0 0.0
    %129 = vmatprep.subr.mxu0 0.0
    %130 = vmatpush2.msra.mxu0 0.0
    %131 = vmatprep.subr.mxu0 0.0
    %132 = vmatpush2.msra.mxu0 0.0
    %133 = vmatprep.subr.mxu0 0.0
    %134 = vmatpush2.msra.mxu0 0.0
    %135 = vmatprep.subr.mxu0 0.0
    %136 = vmatpush2.msra.mxu0 0.0
    %137 = vmatprep.subr.mxu0 0.0
    %138 = vmatpush2.msra.mxu0 0.0
    %139 = vmatprep.subr.mxu0 0.0
    %140 = vmatpush2.msra.mxu0 0.0
    %141 = vmatprep.subr.mxu0 0.0
    %142 = vmatpush2.msra.mxu0 0.0
    %143 = vmatprep.subr.mxu0 0.0
    %144 = vmatpush2.msra.mxu0 0.0
    %145 = vmatprep.subr.mxu0 0.0
    %146 = vmatpush2.msra.mxu0 0.0
    %147 = vmatprep.subr.mxu0 0.0
    %148 = vmatpush2.msra.mxu0 0.0
    %149 = vmatprep.mubr.f32.mxu0 0.0
    %150 = vmatmul.mubr.f32.gmra.mxu0 %v52
    %v151 = vpop.f32.mrf.mxu0
    %v152 = vadd.f32 0.0, %v151
    %v153 = vpop.f32.mrf.mxu0
    %v154 = vadd.f32 0.0, %v153
    %155 = vdwg.mxu0
    %v156 = vrot.slane %v52, 4
    %v157 = vadd.f32 %v52, %v156
    %v158 = vrot.slane %v157, 2
    %v159 = vadd.f32 %v157, %v158
    %v160 = vrot.slane %v159, 1
    %v161 = vadd.f32 %v159, %v160
    %162 = vmatprep.subr.mxu0 %v84
    %163 = vmatpush1.msra.mxu0 %v83
    %164 = vmatprep.subr.mxu0 %v82
    %165 = vmatpush1.msra.mxu0 %v81
    %166 = vmatprep.subr.mxu0 %v80
    %167 = vmatpush1.msra.mxu0 %v79
    %168 = vmatprep.subr.mxu0 %v78
    %169 = vmatpush1.msra.mxu0 %v77
    %170 = vmatprep.subr.mxu0 %v76
    %171 = vmatpush1.msra.mxu0 %v75
    %172 = vmatprep.subr.mxu0 %v74
    %173 = vmatpush1.msra.mxu0 %v73
    %174 = vmatprep.subr.mxu0 %v72
    %175 = vmatpush1.msra.mxu0 %v71
    %176 = vmatprep.subr.mxu0 %v70
    %177 = vmatpush1.msra.mxu0 %v69
    %178 = vmatprep.subr.mxu0 %v68
    %179 = vmatpush1.msra.mxu0 %v67
    %180 = vmatprep.subr.mxu0 %v66
    %181 = vmatpush1.msra.mxu0 %v65
    %182 = vmatprep.subr.mxu0 %v64
    %183 = vmatpush1.msra.mxu0 %v63
    %184 = vmatprep.subr.mxu0 %v62
    %185 = vmatpush1.msra.mxu0 %v61
    %186 = vmatprep.subr.mxu0 %v60
    %187 = vmatpush1.msra.mxu0 %v59
    %188 = vmatprep.subr.mxu0 %v58
    %189 = vmatpush1.msra.mxu0 %v57
    %190 = vmatprep.subr.mxu0 %v56
    %191 = vmatpush1.msra.mxu0 %v55
    %192 = vmatprep.subr.mxu0 %v54
    %193 = vmatpush1.msra.mxu0 %v53
    %194 = vmatprep.subr.mxu0 0.0
    %195 = vmatpush2.msra.mxu0 0.0
    %196 = vmatprep.subr.mxu0 0.0
    %197 = vmatpush2.msra.mxu0 0.0
    %198 = vmatprep.subr.mxu0 0.0
    %199 = vmatpush2.msra.mxu0 0.0
    %200 = vmatprep.subr.mxu0 0.0
    %201 = vmatpush2.msra.mxu0 0.0
    %202 = vmatprep.subr.mxu0 0.0
    %203 = vmatpush2.msra.mxu0 0.0
    %204 = vmatprep.subr.mxu0 0.0
    %205 = vmatpush2.msra.mxu0 0.0
    %206 = vmatprep.subr.mxu0 0.0
    %207 = vmatpush2.msra.mxu0 0.0
    %208 = vmatprep.subr.mxu0 0.0
    %209 = vmatpush2.msra.mxu0 0.0
    %210 = vmatprep.subr.mxu0 0.0
    %211 = vmatpush2.msra.mxu0 0.0
    %212 = vmatprep.subr.mxu0 0.0
    %213 = vmatpush2.msra.mxu0 0.0
    %214 = vmatprep.subr.mxu0 0.0
    %215 = vmatpush2.msra.mxu0 0.0
    %216 = vmatprep.subr.mxu0 0.0
    %217 = vmatpush2.msra.mxu0 0.0
    %218 = vmatprep.subr.mxu0 0.0
    %219 = vmatpush2.msra.mxu0 0.0
    %220 = vmatprep.subr.mxu0 0.0
    %221 = vmatpush2.msra.mxu0 0.0
    %222 = vmatprep.subr.mxu0 0.0
    %223 = vmatpush2.msra.mxu0 0.0
    %224 = vmatprep.subr.mxu0 0.0
    %225 = vmatpush2.msra.mxu0 0.0
    %226 = vmatprep.mubr.f32.mxu0 0.0
    %227 = vmatmul.mubr.f32.gmra.mxu0 %v161
    %v228 = vpop.f32.mrf.mxu0
    %v229 = vadd.f32 0.0, %v228
    %v230 = vpop.f32.mrf.mxu0
    %v231 = vadd.f32 0.0, %v230
    %232 = vdwg.mxu0
    %v233 = vmul.f32 %v229, 0.125
    %v234 = vmul.f32 %v231, 0.125
    %v235 = vlaneseq
    %v236 = vshrl.u32 %v235, 7
    %v237 = vsub.s32 0, %v236
    %v238 = vrot.slane %v233, %v237
    %v239 = vlaneseq
    %v240 = vshrl.u32 %v239, 7
    %v241 = vsub.s32 0, %v240
    %v242 = vrot.slane %v234, %v241
    %v243 = vsub.f32 %v152, %v238
    %v244 = vsub.f32 %v154, %v242
    %v245 = vmul.f32 %v243, %v243
    %v246 = vmul.f32 %v244, %v244
    %v247 = vrot.slane %v245, 4
    %v248 = vadd.f32 %v245, %v247
    %v249 = vrot.slane %v248, 2
    %v250 = vadd.f32 %v248, %v249
    %v251 = vrot.slane %v250, 1
    %v252 = vadd.f32 %v250, %v251
    %v253 = vrot.slane %v246, 4
    %v254 = vadd.f32 %v246, %v253
    %v255 = vrot.slane %v254, 2
    %v256 = vadd.f32 %v254, %v255
    %v257 = vrot.slane %v256, 1
    %v258 = vadd.f32 %v256, %v257
    %v259 = vmul.f32 %v252, 0.125
    %v260 = vmul.f32 %v258, 0.125
    %v261 = vld [vmem:[#allocation7] ss:$2 sm:$0x3]
    %v262 = vadd.f32 %v259, 1e-05
    %v263 = vadd.f32 %v260, 1e-05
    %v264 = vrsqrt.pop %v262
    %v265 = vrsqrt.pop %v263
    %v268 = vcombine.low %v264, %v265
    %v270 = vunpack.c.l.s4 1966171168
    %v271 = vunpack.c.0.s8 %v270
    %v272 = vlaneseq
    %v273 = vshrl.u32 %v272, 7
    %v274 = vsub.s32 %v271, %v273
    %v275 = vrot.slane %v268, %v274
    %v277 = vunpack.c.l.s4 1966171168
    %v278 = vunpack.c.0.s8 %v277
    %v279 = vlaneseq
    %v280 = vshrl.u32 %v279, 7
    %v281 = vsub.s32 %v278, %v280
    %v282 = vrot.slane %v275, %v281
    %v284 = vmul.f32 %v261, %v282
    %v286 = vlaneseq
    %v287 = vshrl.u32 %v286, 7
    %v288 = vsub.s32 0, %v287
    %v289 = vrot.slane %v284, %v288
    %v290 = vlaneseq
    %v291 = vshrl.u32 %v290, 7
    %v292 = vsub.s32 1, %v291
    %v293 = vrot.slane %v284, %v292
    %v296 = vmul.f32 %v243, %v289
    %v297 = vmul.f32 %v244, %v293
    %s298 = scalar_lea.vmem [#allocation7], 1
    %v299 = vld [vmem:[%s298] ss:$2 sm:$0x3]
    %v301 = vlaneseq
    %v302 = vshrl.u32 %v301, 7
    %v303 = vsub.s32 0, %v302
    %v304 = vrot.slane %v299, %v303
    %v305 = vlaneseq
    %v306 = vshrl.u32 %v305, 7
    %v307 = vsub.s32 1, %v306
    %v308 = vrot.slane %v299, %v307
    %v311 = vadd.f32 %v296, %v304
    %v312 = vadd.f32 %v297, %v308
    %v313 = vmax.f32 %v311, 0.0
    %v314 = vmax.f32 %v312, 0.0
    %315 = vst [vmem:[#allocation8] sm:$0xff] %v313
    %316 = vst [vmem:[#allocation8 + $0x8] sm:$0xff] %v314
    // Predicated region
    $region26: #{tpu_custom_call.1} parent=1 // pred_check
      _
    $region27: #{tpu_custom_call.1} parent=1 // pred_check_branch
      %318 = sbr.rel (0) target = $region29
    $region28: #{tpu_custom_call.1} parent=1 // pred_region
      %s320 = ssub.s32 256, 256
      %321 = vsyncadd [#allocation4], %s320
      %s323 = sshll.u32 [#allocation8], 4
      %s324 = int_to_ptr.vmem [resolvable:$true] %s323
      %326 = dma.vmem_to_hbm [thread:$0]  %s324, 256, %s3, [#allocation4]
    $region29: #{tpu_custom_call.1} parent=1 // pred_fallthru
      _
    // Predicated region
    $region30: #{tpu_custom_call.1} parent=1 // pred_check
      _
    $region31: #{tpu_custom_call.1} parent=1 // pred_check_branch
      %328 = sbr.rel (0) target = $region33
    $region32: #{tpu_custom_call.1} parent=1 // pred_region
      %329 = dma.done [#allocation4], 256
    $region33: #{tpu_custom_call.1} parent=1 // pred_fallthru
      _
    %330 = vsyncpa [#allocation3], 1
    %331 = vsyncpa [#allocation6], 1
    %332 = vsyncpa [#allocation4], 1

</llo_original>
